<compile_context>
chip_gen: v5e
topology: v5e:2x2
jax: 0.10.0
libtpu: 0.0.40
codegen_flags: <defaults>
</compile_context>

<pallas_src>
import jax
import jax.numpy as jnp
from jax.experimental import pallas as pl
from jax.experimental.pallas import tpu as pltpu

_HIDDEN = 100                      # logical hidden width (matches PyTorch)
_HIDDEN_PAD = 128                  # lane-aligned hidden width
_TILE_B_MAX = 2048                 # max batch rows per grid step
_VMEM_LIMIT_BYTES = 32 * 1024 * 1024   # explicit scoped-VMEM limit (safe v5e/v6e/v7x)
_VMEM_BUDGET_BYTES = 24 * 1024 * 1024  # tile-derivation budget (headroom under limit)


def _round_up(n, m):
    return ((n + m - 1) // m) * m


def _pick_tile_b(B, d_x, nc, x_itemsize, c_itemsize):
    """Batch-tile size from a VMEM budget; >=2 grid steps when B > 128 (v7x megacore)."""
    # Resident weights/biases (pipeline may double-buffer them -> 2x).
    w_bytes = 2 * (d_x * _HIDDEN_PAD * 2            # w1x (bf16)
                   + nc * _HIDDEN_PAD * 4           # w1c (f32, VPU path)
                   + 3 * _HIDDEN_PAD * _HIDDEN_PAD * 2   # w2..w4 (bf16)
                   + _HIDDEN_PAD * 2                # w5 row (bf16)
                   + 4 * _HIDDEN_PAD * 4 + 4)       # biases (f32)
    # Double-buffered streaming bytes per batch row (x tile + c tile + packed out).
    per_row = 2 * (d_x * x_itemsize + nc * c_itemsize) + 2 * 4
    cap = (_VMEM_BUDGET_BYTES - w_bytes) // per_row
    cap = max(128, min(_TILE_B_MAX, (cap // 128) * 128))

    if B <= 128:
        return B                     # single block == whole batch: no ragged edge at all
    # Split into at least two 128-aligned tiles so ("parallel",) can use both v7x cores.
    half = _round_up((B + 1) // 2, 128)
    return min(cap, half)


def _disc_kernel(x_ref, c_ref,
                 w1x_ref, w1c_ref, b1_ref,
                 w2_ref, b2_ref,
                 w3_ref, b3_ref,
                 w4_ref, b4_ref,
                 w5_ref, b5_ref,
                 out_ref):
    """One batch tile through the 5-layer MLP (bf16 MXU, f32 accumulate)."""
    nc = c_ref.shape[1]

    # ---- layer 1: split matmul replaces the HBM-materialized concat of [x | c] ----
    xb = x_ref[...].astype(jnp.bfloat16)            # no-op if caller already passes bf16
    h = jnp.dot(xb, w1x_ref[...], preferred_element_type=jnp.float32)
    if nc <= 16:
        # Tiny class vector: nc rank-1 updates on the VPU (idle VALU slots) instead of
        # a mostly-empty MXU pass (visible win on v5e, harmless elsewhere).
        cf = c_ref[...].astype(jnp.float32)
        w1c = w1c_ref[...]
        for j in range(nc):
            h = h + cf[:, j:j + 1] * w1c[j:j + 1, :]
    else:
        h = h + jnp.dot(c_ref[...].astype(jnp.bfloat16),
                        w1c_ref[...].astype(jnp.bfloat16),
                        preferred_element_type=jnp.float32)
    h = jnp.maximum(h + b1_ref[...], 0.0)

    # ---- layers 2-4 (ReLU), unrolled at trace time ----
    for w_ref, b_ref in ((w2_ref, b2_ref), (w3_ref, b3_ref), (w4_ref, b4_ref)):
        h = jnp.dot(h.astype(jnp.bfloat16), w_ref[...],
                    preferred_element_type=jnp.float32)
        h = jnp.maximum(h + b_ref[...], 0.0)

    # ---- layer 5: only column 0 is real, so compute it lane-dense over the batch ----
    # (1, H) @ (H, tile_b) -> (1, tile_b): 4 B of writeback per row instead of a padded
    # 128-wide f32 row.  The transpose rides the XLU slot (free under MXU/DMA).
    h_t = h.T                                        # (HIDDEN_PAD, tile_b), f32
    out_row = jnp.dot(w5_ref[...], h_t.astype(jnp.bfloat16),
                      preferred_element_type=jnp.float32)     # (1, tile_b)
    out_ref[...] = out_row + b5_ref[...]             # b5 is (1,1), broadcasts over lanes


def init_params(key, i_dim, kernel_dim, h_dim, nc):
    """kaiming_normal(fan_in, relu) weights, zero biases; stored padded for the kernel."""
    assert kernel_dim % 16 == 0, "kernel_dim has to be a multiple of 16"
    d_x = h_dim * 8 * 8
    d_in = d_x + nc
    dims = [(d_in, _HIDDEN), (_HIDDEN, _HIDDEN), (_HIDDEN, _HIDDEN),
            (_HIDDEN, _HIDDEN), (_HIDDEN, 1)]

    raw = []
    for fi, fo in dims:
        key, sub = jax.random.split(key)
        std = jnp.sqrt(2.0 / fi)   # kaiming normal, mode=fan_in, relu gain
        w = jax.random.normal(sub, (fi, fo), dtype=jnp.float32) * std
        b = jnp.zeros((fo,), dtype=jnp.float32)
        raw.append((w, b))

    def pad_w(w, rows, cols, dtype):
        out = jnp.zeros((rows, cols), jnp.float32)
        return out.at[: w.shape[0], : w.shape[1]].set(w).astype(dtype)

    def pad_b(b, cols):
        out = jnp.zeros((1, cols), jnp.float32)
        return out.at[0, : b.shape[0]].set(b)

    (w1, b1), (w2, b2), (w3, b3), (w4, b4), (w5, b5) = raw
    params = [
        pad_w(w1[:d_x], d_x, _HIDDEN_PAD, jnp.bfloat16),       # w1x
        pad_w(w1[d_x:], nc, _HIDDEN_PAD, jnp.float32),         # w1c (f32: VPU rank-1 path)
        pad_b(b1, _HIDDEN_PAD),
        pad_w(w2, _HIDDEN_PAD, _HIDDEN_PAD, jnp.bfloat16), pad_b(b2, _HIDDEN_PAD),
        pad_w(w3, _HIDDEN_PAD, _HIDDEN_PAD, jnp.bfloat16), pad_b(b3, _HIDDEN_PAD),
        pad_w(w4, _HIDDEN_PAD, _HIDDEN_PAD, jnp.bfloat16), pad_b(b4, _HIDDEN_PAD),
        pad_w(w5.T, 1, _HIDDEN_PAD, jnp.bfloat16),             # w5 as a (1, H) row vector
        b5.reshape(1, 1).astype(jnp.float32),                  # scalar output bias
    ]
    return params


def discriminator_forward(params, x, c):
    """x: (B, h_dim, 8, 8) NCHW;  c: (B, nc, 1, 1) or (B, nc).  Returns (B,)."""
    w1x, w1c, b1, w2, b2, w3, b3, w4, b4, w5, b5 = params
    B = x.shape[0]
    d_x = w1x.shape[0]
    nc = w1c.shape[0]

    # Free views only — no jnp.pad (full HBM copy of the inputs) and no wrapper-side
    # dtype cast (extra HBM round trip).  Callers may pass bf16 x/c to halve input DMA.
    x_flat = x.reshape(B, -1)      # same as torch .view(B, -1)
    c_flat = c.reshape(B, -1)      # robust equivalent of torch .squeeze() for the concat
    assert x_flat.shape[1] == d_x and c_flat.shape[1] == nc

    tile_b = _pick_tile_b(B, d_x, nc, x_flat.dtype.itemsize, c_flat.dtype.itemsize)
    n_tiles = pl.cdiv(B, tile_b)
    out_w = n_tiles * tile_b       # packed lane-dense output row; garbage lanes >= B unused

    def const_spec(arr):           # weights/biases: resident across all grid steps
        return pl.BlockSpec(arr.shape, lambda i: (0, 0))

    out = pl.pallas_call(
        _disc_kernel,
        out_shape=jax.ShapeDtypeStruct((1, out_w), jnp.float32),
        grid=(n_tiles,),
        in_specs=[
            pl.BlockSpec((tile_b, d_x), lambda i: (i, 0)),     # x tile (pipelined)
            pl.BlockSpec((tile_b, nc), lambda i: (i, 0)),      # c tile (pipelined)
            const_spec(w1x), const_spec(w1c), const_spec(b1),
            const_spec(w2), const_spec(b2),
            const_spec(w3), const_spec(b3),
            const_spec(w4), const_spec(b4),
            const_spec(w5), const_spec(b5),
        ],
        out_specs=pl.BlockSpec((1, tile_b), lambda i: (0, i)),
        compiler_params=pltpu.CompilerParams(
            dimension_semantics=("parallel",),
            vmem_limit_bytes=_VMEM_LIMIT_BYTES),
    )(x_flat, c_flat, w1x, w1c, b1, w2, b2, w3, b3, w4, b4, w5, b5)

    # Lane b of the packed row is Linear(100,1) for batch row b; match torch .squeeze().
    return jnp.squeeze(out[0, :B])


def _reference_forward(params, x, c):
    """Pure-JAX reference using the identical mixed-precision math."""
    w1x, w1c, b1, w2, b2, w3, b3, w4, b4, w5, b5 = params
    B = x.shape[0]
    xb = x.reshape(B, -1).astype(jnp.bfloat16)
    cf = c.reshape(B, -1)
    nc = cf.shape[1]
    h = jnp.dot(xb, w1x, preferred_element_type=jnp.float32)
    if nc <= 16:
        h = h + jnp.dot(cf.astype(jnp.float32), w1c)
    else:
        h = h + jnp.dot(cf.astype(jnp.bfloat16), w1c.astype(jnp.bfloat16),
                        preferred_element_type=jnp.float32)
    h = jnp.maximum(h + b1, 0.0)
    for w, b in ((w2, b2), (w3, b3), (w4, b4)):
        h = jnp.dot(h.astype(jnp.bfloat16), w, preferred_element_type=jnp.float32)
        h = jnp.maximum(h + b, 0.0)
    out = jnp.dot(h.astype(jnp.bfloat16), w5.T,
                  preferred_element_type=jnp.float32) + b5
    return jnp.squeeze(out[:, :1])


if __name__ == "__main__":
    # Small synthetic config consistent with the module's forward:
    # x contributes h_dim*8*8 features, c contributes nc class features.
    i_dim, kernel_dim, h_dim, nc = 3, 16, 4, 4
    B = 2

    key = jax.random.PRNGKey(0)
    kp, kx, kc = jax.random.split(key, 3)

    params = init_params(kp, i_dim, kernel_dim, h_dim, nc)
    x = jax.random.normal(kx, (B, h_dim, 8, 8), dtype=jnp.float32)   # NCHW
    c = jax.random.normal(kc, (B, nc, 1, 1), dtype=jnp.float32)

    out = jax.block_until_ready(discriminator_forward(params, x, c))
    ref = _reference_forward(params, x, c)

    assert out.shape == (B,), out.shape
    assert jnp.allclose(out, ref, atol=1e-3, rtol=1e-3), (out, ref)

    print("KERNEL_OK")
</pallas_src>

<mosaic_0001>
module attributes {stable_mosaic.version = 11 : i64} {
  func.func @_disc_kernel(%arg0: i32, %arg1: memref<2x256xf32, #tpu.memory_space<vmem>>, %arg2: memref<2x4xf32, #tpu.memory_space<vmem>>, %arg3: memref<256x128xbf16, #tpu.memory_space<vmem>>, %arg4: memref<4x128xf32, #tpu.memory_space<vmem>>, %arg5: memref<1x128xf32, #tpu.memory_space<vmem>>, %arg6: memref<128x128xbf16, #tpu.memory_space<vmem>>, %arg7: memref<1x128xf32, #tpu.memory_space<vmem>>, %arg8: memref<128x128xbf16, #tpu.memory_space<vmem>>, %arg9: memref<1x128xf32, #tpu.memory_space<vmem>>, %arg10: memref<128x128xbf16, #tpu.memory_space<vmem>>, %arg11: memref<1x128xf32, #tpu.memory_space<vmem>>, %arg12: memref<1x128xbf16, #tpu.memory_space<vmem>>, %arg13: memref<1x1xf32, #tpu.memory_space<vmem>>, %arg14: memref<1x2xf32, #tpu.memory_space<vmem>>) attributes {dimension_semantics = [#tpu.dimension_semantics<parallel>], iteration_bounds = array<i64: 1>, scalar_prefetch = 0 : i64, scratch_operands = 0 : i64, tpu.core_type = #tpu.core_type<tc>, window_params = [{transform_indices = @transform_0, window_bounds = array<i64: 2, 256>}, {transform_indices = @transform_1, window_bounds = array<i64: 2, 4>}, {pipeline_mode = #tpu.pipeline_mode<synchronous>, transform_indices = @transform_2, window_bounds = array<i64: 256, 128>}, {pipeline_mode = #tpu.pipeline_mode<synchronous>, transform_indices = @transform_3, window_bounds = array<i64: 4, 128>}, {pipeline_mode = #tpu.pipeline_mode<synchronous>, transform_indices = @transform_4, window_bounds = array<i64: 1, 128>}, {pipeline_mode = #tpu.pipeline_mode<synchronous>, transform_indices = @transform_5, window_bounds = array<i64: 128, 128>}, {pipeline_mode = #tpu.pipeline_mode<synchronous>, transform_indices = @transform_6, window_bounds = array<i64: 1, 128>}, {pipeline_mode = #tpu.pipeline_mode<synchronous>, transform_indices = @transform_7, window_bounds = array<i64: 128, 128>}, {pipeline_mode = #tpu.pipeline_mode<synchronous>, transform_indices = @transform_8, window_bounds = array<i64: 1, 128>}, {pipeline_mode = #tpu.pipeline_mode<synchronous>, transform_indices = @transform_9, window_bounds = array<i64: 128, 128>}, {pipeline_mode = #tpu.pipeline_mode<synchronous>, transform_indices = @transform_10, window_bounds = array<i64: 1, 128>}, {pipeline_mode = #tpu.pipeline_mode<synchronous>, transform_indices = @transform_11, window_bounds = array<i64: 1, 128>}, {pipeline_mode = #tpu.pipeline_mode<synchronous>, transform_indices = @transform_12, window_bounds = array<i64: 1, 1>}, {transform_indices = @transform_13, window_bounds = array<i64: 1, 2>}]} {
    %c0 = arith.constant 0 : index
    %c0_0 = arith.constant 0 : index
    %0 = vector.load %arg1[%c0, %c0_0] : memref<2x256xf32, #tpu.memory_space<vmem>>, vector<2x256xf32>
    %1 = arith.truncf %0 : vector<2x256xf32> to vector<2x256xbf16>
    %c0_1 = arith.constant 0 : index
    %c0_2 = arith.constant 0 : index
    %2 = vector.load %arg3[%c0_1, %c0_2] : memref<256x128xbf16, #tpu.memory_space<vmem>>, vector<256x128xbf16>
    %cst = arith.constant dense<0.000000e+00> : vector<2x128xf32>
    %3 = tpu.matmul %1, %2, %cst {dimension_numbers = #tpu.dot_dimension_numbers<[1], [0], [0], [1], [0, 0, 1, 1], [], []>} : vector<2x256xbf16>, vector<256x128xbf16>, vector<2x128xf32> -> vector<2x128xf32>
    %c0_3 = arith.constant 0 : index
    %c0_4 = arith.constant 0 : index
    %4 = vector.load %arg2[%c0_3, %c0_4] : memref<2x4xf32, #tpu.memory_space<vmem>>, vector<2x4xf32>
    %c0_5 = arith.constant 0 : index
    %c0_6 = arith.constant 0 : index
    %5 = vector.load %arg4[%c0_5, %c0_6] : memref<4x128xf32, #tpu.memory_space<vmem>>, vector<4x128xf32>
    %6 = vector.extract_strided_slice %4 {offsets = [0, 0], sizes = [2, 1], strides = [1, 1]} : vector<2x4xf32> to vector<2x1xf32>
    %7 = vector.extract_strided_slice %5 {offsets = [0, 0], sizes = [1, 128], strides = [1, 1]} : vector<4x128xf32> to vector<1x128xf32>
    %8 = vector.broadcast %6 : vector<2x1xf32> to vector<2x128xf32>
    %9 = vector.broadcast %7 : vector<1x128xf32> to vector<2x128xf32>
    %10 = arith.mulf %8, %9 : vector<2x128xf32>
    %11 = arith.addf %3, %10 : vector<2x128xf32>
    %12 = vector.extract_strided_slice %4 {offsets = [0, 1], sizes = [2, 1], strides = [1, 1]} : vector<2x4xf32> to vector<2x1xf32>
    %13 = vector.extract_strided_slice %5 {offsets = [1, 0], sizes = [1, 128], strides = [1, 1]} : vector<4x128xf32> to vector<1x128xf32>
    %14 = vector.broadcast %12 : vector<2x1xf32> to vector<2x128xf32>
    %15 = vector.broadcast %13 : vector<1x128xf32> to vector<2x128xf32>
    %16 = arith.mulf %14, %15 : vector<2x128xf32>
    %17 = arith.addf %11, %16 : vector<2x128xf32>
    %18 = vector.extract_strided_slice %4 {offsets = [0, 2], sizes = [2, 1], strides = [1, 1]} : vector<2x4xf32> to vector<2x1xf32>
    %19 = vector.extract_strided_slice %5 {offsets = [2, 0], sizes = [1, 128], strides = [1, 1]} : vector<4x128xf32> to vector<1x128xf32>
    %20 = vector.broadcast %18 : vector<2x1xf32> to vector<2x128xf32>
    %21 = vector.broadcast %19 : vector<1x128xf32> to vector<2x128xf32>
    %22 = arith.mulf %20, %21 : vector<2x128xf32>
    %23 = arith.addf %17, %22 : vector<2x128xf32>
    %24 = vector.extract_strided_slice %4 {offsets = [0, 3], sizes = [2, 1], strides = [1, 1]} : vector<2x4xf32> to vector<2x1xf32>
    %25 = vector.extract_strided_slice %5 {offsets = [3, 0], sizes = [1, 128], strides = [1, 1]} : vector<4x128xf32> to vector<1x128xf32>
    %26 = vector.broadcast %24 : vector<2x1xf32> to vector<2x128xf32>
    %27 = vector.broadcast %25 : vector<1x128xf32> to vector<2x128xf32>
    %28 = arith.mulf %26, %27 : vector<2x128xf32>
    %29 = arith.addf %23, %28 : vector<2x128xf32>
    %c0_7 = arith.constant 0 : index
    %c0_8 = arith.constant 0 : index
    %30 = vector.load %arg5[%c0_7, %c0_8] : memref<1x128xf32, #tpu.memory_space<vmem>>, vector<1x128xf32>
    %31 = vector.broadcast %30 : vector<1x128xf32> to vector<2x128xf32>
    %32 = arith.addf %29, %31 : vector<2x128xf32>
    %cst_9 = arith.constant 0.000000e+00 : f32
    %33 = vector.broadcast %cst_9 : f32 to vector<2x128xf32>
    %34 = arith.maximumf %32, %33 : vector<2x128xf32>
    %35 = arith.truncf %34 : vector<2x128xf32> to vector<2x128xbf16>
    %c0_10 = arith.constant 0 : index
    %c0_11 = arith.constant 0 : index
    %36 = vector.load %arg6[%c0_10, %c0_11] : memref<128x128xbf16, #tpu.memory_space<vmem>>, vector<128x128xbf16>
    %cst_12 = arith.constant dense<0.000000e+00> : vector<2x128xf32>
    %37 = tpu.matmul %35, %36, %cst_12 {dimension_numbers = #tpu.dot_dimension_numbers<[1], [0], [0], [1], [0, 0, 1, 1], [], []>} : vector<2x128xbf16>, vector<128x128xbf16>, vector<2x128xf32> -> vector<2x128xf32>
    %c0_13 = arith.constant 0 : index
    %c0_14 = arith.constant 0 : index
    %38 = vector.load %arg7[%c0_13, %c0_14] : memref<1x128xf32, #tpu.memory_space<vmem>>, vector<1x128xf32>
    %39 = vector.broadcast %38 : vector<1x128xf32> to vector<2x128xf32>
    %40 = arith.addf %37, %39 : vector<2x128xf32>
    %cst_15 = arith.constant 0.000000e+00 : f32
    %41 = vector.broadcast %cst_15 : f32 to vector<2x128xf32>
    %42 = arith.maximumf %40, %41 : vector<2x128xf32>
    %43 = arith.truncf %42 : vector<2x128xf32> to vector<2x128xbf16>
    %c0_16 = arith.constant 0 : index
    %c0_17 = arith.constant 0 : index
    %44 = vector.load %arg8[%c0_16, %c0_17] : memref<128x128xbf16, #tpu.memory_space<vmem>>, vector<128x128xbf16>
    %cst_18 = arith.constant dense<0.000000e+00> : vector<2x128xf32>
    %45 = tpu.matmul %43, %44, %cst_18 {dimension_numbers = #tpu.dot_dimension_numbers<[1], [0], [0], [1], [0, 0, 1, 1], [], []>} : vector<2x128xbf16>, vector<128x128xbf16>, vector<2x128xf32> -> vector<2x128xf32>
    %c0_19 = arith.constant 0 : index
    %c0_20 = arith.constant 0 : index
    %46 = vector.load %arg9[%c0_19, %c0_20] : memref<1x128xf32, #tpu.memory_space<vmem>>, vector<1x128xf32>
    %47 = vector.broadcast %46 : vector<1x128xf32> to vector<2x128xf32>
    %48 = arith.addf %45, %47 : vector<2x128xf32>
    %cst_21 = arith.constant 0.000000e+00 : f32
    %49 = vector.broadcast %cst_21 : f32 to vector<2x128xf32>
    %50 = arith.maximumf %48, %49 : vector<2x128xf32>
    %51 = arith.truncf %50 : vector<2x128xf32> to vector<2x128xbf16>
    %c0_22 = arith.constant 0 : index
    %c0_23 = arith.constant 0 : index
    %52 = vector.load %arg10[%c0_22, %c0_23] : memref<128x128xbf16, #tpu.memory_space<vmem>>, vector<128x128xbf16>
    %cst_24 = arith.constant dense<0.000000e+00> : vector<2x128xf32>
    %53 = tpu.matmul %51, %52, %cst_24 {dimension_numbers = #tpu.dot_dimension_numbers<[1], [0], [0], [1], [0, 0, 1, 1], [], []>} : vector<2x128xbf16>, vector<128x128xbf16>, vector<2x128xf32> -> vector<2x128xf32>
    %c0_25 = arith.constant 0 : index
    %c0_26 = arith.constant 0 : index
    %54 = vector.load %arg11[%c0_25, %c0_26] : memref<1x128xf32, #tpu.memory_space<vmem>>, vector<1x128xf32>
    %55 = vector.broadcast %54 : vector<1x128xf32> to vector<2x128xf32>
    %56 = arith.addf %53, %55 : vector<2x128xf32>
    %cst_27 = arith.constant 0.000000e+00 : f32
    %57 = vector.broadcast %cst_27 : f32 to vector<2x128xf32>
    %58 = arith.maximumf %56, %57 : vector<2x128xf32>
    %59 = tpu.transpose %58, [1, 0] : vector<2x128xf32> -> vector<128x2xf32>
    %c0_28 = arith.constant 0 : index
    %c0_29 = arith.constant 0 : index
    %60 = vector.load %arg12[%c0_28, %c0_29] : memref<1x128xbf16, #tpu.memory_space<vmem>>, vector<1x128xbf16>
    %61 = arith.truncf %59 : vector<128x2xf32> to vector<128x2xbf16>
    %cst_30 = arith.constant dense<0.000000e+00> : vector<1x2xf32>
    %62 = tpu.matmul %60, %61, %cst_30 {dimension_numbers = #tpu.dot_dimension_numbers<[1], [0], [0], [1], [0, 0, 1, 1], [], []>} : vector<1x128xbf16>, vector<128x2xbf16>, vector<1x2xf32> -> vector<1x2xf32>
    %c0_31 = arith.constant 0 : index
    %c0_32 = arith.constant 0 : index
    %63 = vector.load %arg13[%c0_31, %c0_32] : memref<1x1xf32, #tpu.memory_space<vmem>>, vector<1x1xf32>
    %64 = vector.broadcast %63 : vector<1x1xf32> to vector<1x2xf32>
    %65 = arith.addf %62, %64 : vector<1x2xf32>
    %c0_33 = arith.constant 0 : index
    %c0_34 = arith.constant 0 : index
    %66 = vector.load %arg14[%c0_33, %c0_34] : memref<1x2xf32, #tpu.memory_space<vmem>>, vector<1x2xf32>
    tpu.vector_store %arg14[%c0_33, %c0_34], %65 {strides = array<i32>} : memref<1x2xf32, #tpu.memory_space<vmem>>, vector<1x2xf32>,
    return
  }
  func.func @transform_0(%arg0: i32) -> (i32, i32) {
    %c0_i32 = arith.constant 0 : i32
    %c0_i32_0 = arith.constant 0 : i32
    return %arg0, %c0_i32 : i32, i32
  }
  func.func @transform_1(%arg0: i32) -> (i32, i32) {
    %c0_i32 = arith.constant 0 : i32
    %c0_i32_0 = arith.constant 0 : i32
    return %arg0, %c0_i32 : i32, i32
  }
  func.func @transform_2(%arg0: i32) -> (i32, i32) {
    %c0_i32 = arith.constant 0 : i32
    %c0_i32_0 = arith.constant 0 : i32
    %c0_i32_1 = arith.constant 0 : i32
    return %c0_i32, %c0_i32_0 : i32, i32
  }
  func.func @transform_3(%arg0: i32) -> (i32, i32) {
    %c0_i32 = arith.constant 0 : i32
    %c0_i32_0 = arith.constant 0 : i32
    %c0_i32_1 = arith.constant 0 : i32
    return %c0_i32, %c0_i32_0 : i32, i32
  }
  func.func @transform_4(%arg0: i32) -> (i32, i32) {
    %c0_i32 = arith.constant 0 : i32
    %c0_i32_0 = arith.constant 0 : i32
    %c0_i32_1 = arith.constant 0 : i32
    return %c0_i32, %c0_i32_0 : i32, i32
  }
  func.func @transform_5(%arg0: i32) -> (i32, i32) {
    %c0_i32 = arith.constant 0 : i32
    %c0_i32_0 = arith.constant 0 : i32
    %c0_i32_1 = arith.constant 0 : i32
    return %c0_i32, %c0_i32_0 : i32, i32
  }
  func.func @transform_6(%arg0: i32) -> (i32, i32) {
    %c0_i32 = arith.constant 0 : i32
    %c0_i32_0 = arith.constant 0 : i32
    %c0_i32_1 = arith.constant 0 : i32
    return %c0_i32, %c0_i32_0 : i32, i32
  }
  func.func @transform_7(%arg0: i32) -> (i32, i32) {
    %c0_i32 = arith.constant 0 : i32
    %c0_i32_0 = arith.constant 0 : i32
    %c0_i32_1 = arith.constant 0 : i32
    return %c0_i32, %c0_i32_0 : i32, i32
  }
  func.func @transform_8(%arg0: i32) -> (i32, i32) {
    %c0_i32 = arith.constant 0 : i32
    %c0_i32_0 = arith.constant 0 : i32
    %c0_i32_1 = arith.constant 0 : i32
    return %c0_i32, %c0_i32_0 : i32, i32
  }
  func.func @transform_9(%arg0: i32) -> (i32, i32) {
    %c0_i32 = arith.constant 0 : i32
    %c0_i32_0 = arith.constant 0 : i32
    %c0_i32_1 = arith.constant 0 : i32
    return %c0_i32, %c0_i32_0 : i32, i32
  }
  func.func @transform_10(%arg0: i32) -> (i32, i32) {
    %c0_i32 = arith.constant 0 : i32
    %c0_i32_0 = arith.constant 0 : i32
    %c0_i32_1 = arith.constant 0 : i32
    return %c0_i32, %c0_i32_0 : i32, i32
  }
  func.func @transform_11(%arg0: i32) -> (i32, i32) {
    %c0_i32 = arith.constant 0 : i32
    %c0_i32_0 = arith.constant 0 : i32
    %c0_i32_1 = arith.constant 0 : i32
    return %c0_i32, %c0_i32_0 : i32, i32
  }
  func.func @transform_12(%arg0: i32) -> (i32, i32) {
    %c0_i32 = arith.constant 0 : i32
    %c0_i32_0 = arith.constant 0 : i32
    %c0_i32_1 = arith.constant 0 : i32
    return %c0_i32, %c0_i32_0 : i32, i32
  }
  func.func @transform_13(%arg0: i32) -> (i32, i32) {
    %c0_i32 = arith.constant 0 : i32
    %c0_i32_0 = arith.constant 0 : i32
    return %c0_i32, %arg0 : i32, i32
  }
}

</mosaic_0001>

<llo_original>
// kernel: tpu_custom_call.1
$region0: #{tpu_custom_call.1}
  #allocation0 [shape = 'u32[]', space=smem, size = 0x4, offset = 0x4, fixed_abs, tag = 'smem constant byte address 0x4 - core index']
  #allocation1 [shape = 'u32[72,128]{1,0:T(1,128)}', space=vmem, size = 0x9000, scoped, tag = 'internal scratch']
  #allocation2 [shape = 'f32[1,1]{1,0:T(1,128)S(1)}', space=vmem, size = 0x200, scoped, tag = 'scoped memory for tpu_custom_call.1']
  %s0 = inlined_call_operand.hbm [shape: f32[2,256], index: 0, kind: input, shape index: {}]
  %s1 = inlined_call_operand.hbm [shape: f32[2,4], index: 1, kind: input, shape index: {}]
  %s2 = inlined_call_operand.hbm [shape: bf16[256,128], index: 2, kind: input, shape index: {}]
  %s3 = inlined_call_operand.vmem [shape: f32[4,128], index: 3, kind: input, shape index: {}]
  %s4 = inlined_call_operand.vmem [shape: f32[1,128], index: 4, kind: input, shape index: {}]
  %s5 = inlined_call_operand.hbm [shape: bf16[128,128], index: 5, kind: input, shape index: {}]
  %s6 = inlined_call_operand.vmem [shape: f32[1,128], index: 6, kind: input, shape index: {}]
  %s7 = inlined_call_operand.hbm [shape: bf16[128,128], index: 7, kind: input, shape index: {}]
  %s8 = inlined_call_operand.vmem [shape: f32[1,128], index: 8, kind: input, shape index: {}]
  %s9 = inlined_call_operand.hbm [shape: bf16[128,128], index: 9, kind: input, shape index: {}]
  %s10 = inlined_call_operand.vmem [shape: f32[1,128], index: 10, kind: input, shape index: {}]
  %s11 = inlined_call_operand.vmem [shape: bf16[1,128], index: 11, kind: input, shape index: {}]
  %s12 = inlined_call_operand.<no memory space> [shape: f32[1,1], index: 12, kind: input, shape index: {}]
  %s13 = inlined_call_operand.hbm [shape: f32[1,2], index: 13, kind: output, shape index: {}]
  %s14 = sld [smem:[#allocation0]]
  $region86: #{tpu_custom_call.1} parent=0
    _
  %s16 = ssub.s32 1, %s14
  %s17 = scalar_select 0, %s16, %s14
  %v18 = vstv %s12
  %19 = vst [vmem:[#allocation2] sm:$0x1] %v18
  $region1: #{tpu_custom_call.1} parent=0
    #allocation3 [shape = 'u8[2048]{0}', space=vmem, size = 0x800, scoped, tag = 'input window, operand 0, single buffered']
    #allocation4 [shape = 's32[1]{0}', space=sflag, size = 0x4, scoped, tag = 'scoped memory for tpu_custom_call.1']
    #allocation5 [shape = 's32[1]{0}', space=sflag, size = 0x4, scoped, tag = 'scoped memory for tpu_custom_call.1']
    #allocation6 [shape = 'u8[1024]{0}', space=vmem, size = 0x400, scoped, tag = 'input window, operand 1, single buffered']
    #allocation7 [shape = 's32[1]{0}', space=sflag, size = 0x4, scoped, tag = 'scoped memory for tpu_custom_call.1']
    #allocation8 [shape = 'u8[65536]{0}', space=vmem, size = 0x10000, scoped, tag = 'input window, operand 2, single buffered']
    #allocation9 [shape = 'u8[32768]{0}', space=vmem, size = 0x8000, scoped, tag = 'input window, operand 5, single buffered']
    #allocation10 [shape = 's32[1]{0}', space=sflag, size = 0x4, scoped, tag = 'scoped memory for tpu_custom_call.1']
    #allocation11 [shape = 'u8[32768]{0}', space=vmem, size = 0x8000, scoped, tag = 'input window, operand 7, single buffered']
    #allocation12 [shape = 'u8[32768]{0}', space=vmem, size = 0x8000, scoped, tag = 'input window, operand 9, single buffered']
    #allocation13 [shape = 's32[1]{0}', space=sflag, size = 0x4, scoped, tag = 'scoped memory for tpu_custom_call.1']
    #allocation14 [shape = 'u8[512]{0}', space=vmem, size = 0x400, scoped, tag = 'output window, operand 0, single buffered']
    %20 = vsyncpa [#allocation4], 0
    %21 = vsyncpa [#allocation7], 0
    %22 = vsyncpa [#allocation10], 0
    %23 = vsyncpa [#allocation13], 0
    %24 = vsyncpa [#allocation5], 0
    // Predicated region
    $region2: #{tpu_custom_call.1} parent=1 // pred_check
      _
    $region3: #{tpu_custom_call.1} parent=1 // pred_check_branch
      %26 = sbr.rel (0) target = $region5
    $region4: #{tpu_custom_call.1} parent=1 // pred_region
      %28 = vsyncadd [#allocation4], 0
      %s30 = sshll.u32 %s0, 4
      %s31 = int_to_ptr.hbm [resolvable:$true] %s30
      %s32 = sshll.u32 [#allocation3], 4
      %s33 = int_to_ptr.vmem [resolvable:$true] %s32
      %35 = dma.hbm_to_vmem [thread:$0]  %s31, 64, %s33, [#allocation4]
    $region5: #{tpu_custom_call.1} parent=1 // pred_fallthru
      _
    // Predicated region
    $region6: #{tpu_custom_call.1} parent=1 // pred_check
      _
    $region7: #{tpu_custom_call.1} parent=1 // pred_check_branch
      %37 = sbr.rel (0) target = $region9
    $region8: #{tpu_custom_call.1} parent=1 // pred_region
      %39 = vsyncadd [#allocation7], 0
      %s41 = sshll.u32 %s1, 4
      %s42 = int_to_ptr.hbm [resolvable:$true] %s41
      %s43 = sshll.u32 [#allocation6], 4
      %s44 = int_to_ptr.vmem [resolvable:$true] %s43
      %46 = dma.hbm_to_vmem [thread:$0]  %s42, 32, %s44, [#allocation7]
    $region9: #{tpu_custom_call.1} parent=1 // pred_fallthru
      _
    // Predicated region
    $region10: #{tpu_custom_call.1} parent=1 // pred_check
      _
    $region11: #{tpu_custom_call.1} parent=1 // pred_check_branch
      %48 = sbr.rel (0) target = $region13
    $region12: #{tpu_custom_call.1} parent=1 // pred_region
      %50 = vsyncadd [#allocation7], 0
      %s51 = sshll.u32 %s2, 4
      %s52 = int_to_ptr.hbm [resolvable:$true] %s51
      %s53 = sshll.u32 [#allocation8], 4
      %s54 = int_to_ptr.vmem [resolvable:$true] %s53
      %59 = dma.hbm_to_vmem [thread:$0]  %s52, 2048, %s54, [#allocation7], 64, 64, 4
    $region13: #{tpu_custom_call.1} parent=1 // pred_fallthru
      _
    // Predicated region
    $region14: #{tpu_custom_call.1} parent=1 // pred_check
      _
    $region15: #{tpu_custom_call.1} parent=1 // pred_check_branch
      %61 = sbr.rel (0) target = $region17
    $region16: #{tpu_custom_call.1} parent=1 // pred_region
      _
    $region17: #{tpu_custom_call.1} parent=1 // pred_fallthru
      _
    // Predicated region
    $region18: #{tpu_custom_call.1} parent=1 // pred_check
      _
    $region19: #{tpu_custom_call.1} parent=1 // pred_check_branch
      %63 = sbr.rel (0) target = $region21
    $region20: #{tpu_custom_call.1} parent=1 // pred_region
      _
    $region21: #{tpu_custom_call.1} parent=1 // pred_fallthru
      _
    // Predicated region
    $region22: #{tpu_custom_call.1} parent=1 // pred_check
      _
    $region23: #{tpu_custom_call.1} parent=1 // pred_check_branch
      %65 = sbr.rel (0) target = $region25
    $region24: #{tpu_custom_call.1} parent=1 // pred_region
      %67 = vsyncadd [#allocation10], 0
      %s68 = sshll.u32 %s5, 4
      %s69 = int_to_ptr.hbm [resolvable:$true] %s68
      %s70 = sshll.u32 [#allocation9], 4
      %s71 = int_to_ptr.vmem [resolvable:$true] %s70
      %76 = dma.hbm_to_vmem [thread:$0]  %s69, 1024, %s71, [#allocation10], 64, 64, 4
    $region25: #{tpu_custom_call.1} parent=1 // pred_fallthru
      _
    // Predicated region
    $region26: #{tpu_custom_call.1} parent=1 // pred_check
      _
    $region27: #{tpu_custom_call.1} parent=1 // pred_check_branch
      %78 = sbr.rel (0) target = $region29
    $region28: #{tpu_custom_call.1} parent=1 // pred_region
      _
    $region29: #{tpu_custom_call.1} parent=1 // pred_fallthru
      _
    // Predicated region
    $region30: #{tpu_custom_call.1} parent=1 // pred_check
      _
    $region31: #{tpu_custom_call.1} parent=1 // pred_check_branch
      %80 = sbr.rel (0) target = $region33
    $region32: #{tpu_custom_call.1} parent=1 // pred_region
      %82 = vsyncadd [#allocation10], 0
      %s83 = sshll.u32 %s7, 4
      %s84 = int_to_ptr.hbm [resolvable:$true] %s83
      %s85 = sshll.u32 [#allocation11], 4
      %s86 = int_to_ptr.vmem [resolvable:$true] %s85
      %91 = dma.hbm_to_vmem [thread:$0]  %s84, 1024, %s86, [#allocation10], 64, 64, 4
    $region33: #{tpu_custom_call.1} parent=1 // pred_fallthru
      _
    // Predicated region
    $region34: #{tpu_custom_call.1} parent=1 // pred_check
      _
    $region35: #{tpu_custom_call.1} parent=1 // pred_check_branch
      %93 = sbr.rel (0) target = $region37
    $region36: #{tpu_custom_call.1} parent=1 // pred_region
      _
    $region37: #{tpu_custom_call.1} parent=1 // pred_fallthru
      _
    // Predicated region
    $region38: #{tpu_custom_call.1} parent=1 // pred_check
      _
    $region39: #{tpu_custom_call.1} parent=1 // pred_check_branch
      %95 = sbr.rel (0) target = $region41
    $region40: #{tpu_custom_call.1} parent=1 // pred_region
      %97 = vsyncadd [#allocation13], 0
      %s98 = sshll.u32 %s9, 4
      %s99 = int_to_ptr.hbm [resolvable:$true] %s98
      %s100 = sshll.u32 [#allocation12], 4
      %s101 = int_to_ptr.vmem [resolvable:$true] %s100
      %106 = dma.hbm_to_vmem [thread:$0]  %s99, 1024, %s101, [#allocation13], 64, 64, 4
    $region41: #{tpu_custom_call.1} parent=1 // pred_fallthru
      _
    // Predicated region
    $region42: #{tpu_custom_call.1} parent=1 // pred_check
      _
    $region43: #{tpu_custom_call.1} parent=1 // pred_check_branch
      %108 = sbr.rel (0) target = $region45
    $region44: #{tpu_custom_call.1} parent=1 // pred_region
      _
    $region45: #{tpu_custom_call.1} parent=1 // pred_fallthru
      _
    // Predicated region
    $region46: #{tpu_custom_call.1} parent=1 // pred_check
      _
    $region47: #{tpu_custom_call.1} parent=1 // pred_check_branch
      %110 = sbr.rel (0) target = $region49
    $region48: #{tpu_custom_call.1} parent=1 // pred_region
      _
    $region49: #{tpu_custom_call.1} parent=1 // pred_fallthru
      _
    // Predicated region
    $region50: #{tpu_custom_call.1} parent=1 // pred_check
      _
    $region51: #{tpu_custom_call.1} parent=1 // pred_check_branch
      %112 = sbr.rel (0) target = $region53
    $region52: #{tpu_custom_call.1} parent=1 // pred_region
      _
    $region53: #{tpu_custom_call.1} parent=1 // pred_fallthru
      _
    // Predicated region
    $region54: #{tpu_custom_call.1} parent=1 // pred_check
      _
    $region55: #{tpu_custom_call.1} parent=1 // pred_check_branch
      %114 = sbr.rel (0) target = $region57
    $region56: #{tpu_custom_call.1} parent=1 // pred_region
      %116 = dma.done [#allocation4], 64
    $region57: #{tpu_custom_call.1} parent=1 // pred_fallthru
      _
    // Predicated region
    $region58: #{tpu_custom_call.1} parent=1 // pred_check
      _
    $region59: #{tpu_custom_call.1} parent=1 // pred_check_branch
      %118 = sbr.rel (0) target = $region61
    $region60: #{tpu_custom_call.1} parent=1 // pred_region
      %120 = dma.done [#allocation7], 32
    $region61: #{tpu_custom_call.1} parent=1 // pred_fallthru
      _
    // Predicated region
    $region62: #{tpu_custom_call.1} parent=1 // pred_check
      _
    $region63: #{tpu_custom_call.1} parent=1 // pred_check_branch
      %122 = sbr.rel (0) target = $region65
    $region64: #{tpu_custom_call.1} parent=1 // pred_region
      %124 = dma.done [#allocation7], 2048
    $region65: #{tpu_custom_call.1} parent=1 // pred_fallthru
      _
    // Predicated region
    $region66: #{tpu_custom_call.1} parent=1 // pred_check
      _
    $region67: #{tpu_custom_call.1} parent=1 // pred_check_branch
      %126 = sbr.rel (0) target = $region69
    $region68: #{tpu_custom_call.1} parent=1 // pred_region
      %128 = dma.done [#allocation10], 1024
    $region69: #{tpu_custom_call.1} parent=1 // pred_fallthru
      _
    // Predicated region
    $region70: #{tpu_custom_call.1} parent=1 // pred_check
      _
    $region71: #{tpu_custom_call.1} parent=1 // pred_check_branch
      %130 = sbr.rel (0) target = $region73
    $region72: #{tpu_custom_call.1} parent=1 // pred_region
      %132 = dma.done [#allocation10], 1024
    $region73: #{tpu_custom_call.1} parent=1 // pred_fallthru
      _
    // Predicated region
    $region74: #{tpu_custom_call.1} parent=1 // pred_check
      _
    $region75: #{tpu_custom_call.1} parent=1 // pred_check_branch
      %134 = sbr.rel (0) target = $region77
    $region76: #{tpu_custom_call.1} parent=1 // pred_region
      %136 = dma.done [#allocation13], 1024
    $region77: #{tpu_custom_call.1} parent=1 // pred_fallthru
      _
    %v137 = vld [vmem:[#allocation3] sm:$0xf]
    %139 = vst [vmem:[#allocation1] ss:$4 sm:$0xff] %v137
    %v140 = vld.sshfl [vmem:[#allocation1] sm:$0xff pattern:$0x73625140]
    %v141 = vld.sshfl [vmem:[#allocation1 + $0x8] sm:$0xff pattern:$0x73625140]
    %v144 = vpack.c.bf16 %v140, %v140
    %v145 = vpack.c.bf16 %v141, %v141
    %v146 = vld [vmem:[#allocation8] sm:$0xf]
    %v147 = vld [vmem:[#allocation8 + $0x4] sm:$0xf]
    %v148 = vld [vmem:[#allocation8 + $0x8] sm:$0xf]
    %v149 = vld [vmem:[#allocation8 + $0xc] sm:$0xf]
    %v150 = vld [vmem:[#allocation8 + $0x10] sm:$0xf]
    %v151 = vld [vmem:[#allocation8 + $0x14] sm:$0xf]
    %v152 = vld [vmem:[#allocation8 + $0x18] sm:$0xf]
    %v153 = vld [vmem:[#allocation8 + $0x1c] sm:$0xf]
    %v154 = vld [vmem:[#allocation8 + $0x20] sm:$0xf]
    %v155 = vld [vmem:[#allocation8 + $0x24] sm:$0xf]
    %v156 = vld [vmem:[#allocation8 + $0x28] sm:$0xf]
    %v157 = vld [vmem:[#allocation8 + $0x2c] sm:$0xf]
    %v158 = vld [vmem:[#allocation8 + $0x30] sm:$0xf]
    %v159 = vld [vmem:[#allocation8 + $0x34] sm:$0xf]
    %v160 = vld [vmem:[#allocation8 + $0x38] sm:$0xf]
    %v161 = vld [vmem:[#allocation8 + $0x3c] sm:$0xf]
    %v162 = vld [vmem:[#allocation8 + $0x40] sm:$0xf]
    %v163 = vld [vmem:[#allocation8 + $0x44] sm:$0xf]
    %v164 = vld [vmem:[#allocation8 + $0x48] sm:$0xf]
    %v165 = vld [vmem:[#allocation8 + $0x4c] sm:$0xf]
    %v166 = vld [vmem:[#allocation8 + $0x50] sm:$0xf]
    %v167 = vld [vmem:[#allocation8 + $0x54] sm:$0xf]
    %v168 = vld [vmem:[#allocation8 + $0x58] sm:$0xf]
    %v169 = vld [vmem:[#allocation8 + $0x5c] sm:$0xf]
    %v170 = vld [vmem:[#allocation8 + $0x60] sm:$0xf]
    %v171 = vld [vmem:[#allocation8 + $0x64] sm:$0xf]
    %v172 = vld [vmem:[#allocation8 + $0x68] sm:$0xf]
    %v173 = vld [vmem:[#allocation8 + $0x6c] sm:$0xf]
    %v174 = vld [vmem:[#allocation8 + $0x70] sm:$0xf]
    %v175 = vld [vmem:[#allocation8 + $0x74] sm:$0xf]
    %v176 = vld [vmem:[#allocation8 + $0x78] sm:$0xf]
    %v177 = vld [vmem:[#allocation8 + $0x7c] sm:$0xf]
    %v178 = vld [vmem:[#allocation6] sm:$0x3]
    %v179 = vld [vmem:[%s3] sm:$0xf]
    %181 = vset.pattern.permute.xlu0 0
    %182 = vperm.xlu0 %181, %v178
    %v183 = vpop.permute.xlu0 %182
    %v185 = vperm.slane %v179, 0
    %v186 = vmul.f32 %v183, %v185
    %v219 = vunpack.c.l.b16 %v146
    %v220 = vunpack.c.l.b16 %v147
    %v221 = vunpack.c.l.b16 %v148
    %v222 = vunpack.c.l.b16 %v149
    %v223 = vunpack.c.l.b16 %v150
    %v224 = vunpack.c.l.b16 %v151
    %v225 = vunpack.c.l.b16 %v152
    %v226 = vunpack.c.l.b16 %v153
    %v227 = vunpack.c.l.b16 %v154
    %v228 = vunpack.c.l.b16 %v155
    %v229 = vunpack.c.l.b16 %v156
    %v230 = vunpack.c.l.b16 %v157
    %v231 = vunpack.c.l.b16 %v158
    %v232 = vunpack.c.l.b16 %v159
    %v233 = vunpack.c.l.b16 %v160
    %v234 = vunpack.c.l.b16 %v161
    %v235 = vunpack.c.l.b16 %v162
    %v236 = vunpack.c.l.b16 %v163
    %v237 = vunpack.c.l.b16 %v164
    %v238 = vunpack.c.l.b16 %v165
    %v239 = vunpack.c.l.b16 %v166
    %v240 = vunpack.c.l.b16 %v167
    %v241 = vunpack.c.l.b16 %v168
    %v242 = vunpack.c.l.b16 %v169
    %v243 = vunpack.c.l.b16 %v170
    %v244 = vunpack.c.l.b16 %v171
    %v245 = vunpack.c.l.b16 %v172
    %v246 = vunpack.c.l.b16 %v173
    %v247 = vunpack.c.l.b16 %v174
    %v248 = vunpack.c.l.b16 %v175
    %v249 = vunpack.c.l.b16 %v176
    %v250 = vunpack.c.l.b16 %v177
    %v251 = vpack.c.b16 %v220, %v219
    %v252 = vpack.c.b16 %v222, %v221
    %v253 = vpack.c.b16 %v224, %v223
    %v254 = vpack.c.b16 %v226, %v225
    %v255 = vpack.c.b16 %v228, %v227
    %v256 = vpack.c.b16 %v230, %v229
    %v257 = vpack.c.b16 %v232, %v231
    %v258 = vpack.c.b16 %v234, %v233
    %v259 = vpack.c.b16 %v236, %v235
    %v260 = vpack.c.b16 %v238, %v237
    %v261 = vpack.c.b16 %v240, %v239
    %v262 = vpack.c.b16 %v242, %v241
    %v263 = vpack.c.b16 %v244, %v243
    %v264 = vpack.c.b16 %v246, %v245
    %v265 = vpack.c.b16 %v248, %v247
    %v266 = vpack.c.b16 %v250, %v249
    %283 = vmatpush.bf16.msra.mxu0 %v258
    %284 = vmatpush.bf16.msra.mxu0 %v257
    %285 = vmatpush.bf16.msra.mxu0 %v256
    %286 = vmatpush.bf16.msra.mxu0 %v255
    %287 = vmatpush.bf16.msra.mxu0 %v254
    %288 = vmatpush.bf16.msra.mxu0 %v253
    %289 = vmatpush.bf16.msra.mxu0 %v252
    %290 = vmatpush.bf16.msra.mxu0 %v251
    %291 = vmatmul.bf16.gmra.mxu0 %v144
    %v292 = vpop.f32.mrf.mxu0
    %v293 = vadd.f32 %v186, %v292
    %v294 = vpop.f32.mrf.mxu0
    %295 = vdwg.mxu0
    %296 = vmatpush.bf16.msra.mxu0 %v266
    %297 = vmatpush.bf16.msra.mxu0 %v265
    %298 = vmatpush.bf16.msra.mxu0 %v264
    %299 = vmatpush.bf16.msra.mxu0 %v263
    %300 = vmatpush.bf16.msra.mxu0 %v262
    %301 = vmatpush.bf16.msra.mxu0 %v261
    %302 = vmatpush.bf16.msra.mxu0 %v260
    %303 = vmatpush.bf16.msra.mxu0 %v259
    %304 = vmatmul.bf16.gmra.mxu0 %v145
    %v305 = vpop.f32.mrf.mxu0
    %v306 = vadd.f32 %v293, %v305
    %v307 = vpop.f32.mrf.mxu0
    %308 = vdwg.mxu0
    %309 = vset.pattern.permute.xlu0 1
    %310 = vperm.xlu0 %309, %v178
    %v311 = vpop.permute.xlu0 %310
    %v313 = vperm.slane %v179, 1
    %v314 = vmul.f32 %v311, %v313
    %v315 = vadd.f32 %v306, %v314
    %316 = vset.pattern.permute.xlu0 2
    %317 = vperm.xlu0 %316, %v178
    %v318 = vpop.permute.xlu0 %317
    %v320 = vperm.slane %v179, 2
    %v321 = vmul.f32 %v318, %v320
    %v322 = vadd.f32 %v315, %v321
    %323 = vset.pattern.permute.xlu0 3
    %324 = vperm.xlu0 %323, %v178
    %v325 = vpop.permute.xlu0 %324
    %v327 = vperm.slane %v179, 3
    %v328 = vmul.f32 %v325, %v327
    %v329 = vadd.f32 %v322, %v328
    %v330 = vld [vmem:[%s4] sm:$0x1]
    %v332 = vperm.slane %v330, 0
    %v334 = vadd.f32 %v329, %v332
    %v335 = vmax.f32 %v334, 0.0
    %v336 = vpack.c.bf16 %v335, %v335
    %v337 = vld [vmem:[#allocation9] sm:$0xf]
    %v338 = vld [vmem:[#allocation9 + $0x4] sm:$0xf]
    %v339 = vld [vmem:[#allocation9 + $0x8] sm:$0xf]
    %v340 = vld [vmem:[#allocation9 + $0xc] sm:$0xf]
    %v341 = vld [vmem:[#allocation9 + $0x10] sm:$0xf]
    %v342 = vld [vmem:[#allocation9 + $0x14] sm:$0xf]
    %v343 = vld [vmem:[#allocation9 + $0x18] sm:$0xf]
    %v344 = vld [vmem:[#allocation9 + $0x1c] sm:$0xf]
    %v345 = vld [vmem:[#allocation9 + $0x20] sm:$0xf]
    %v346 = vld [vmem:[#allocation9 + $0x24] sm:$0xf]
    %v347 = vld [vmem:[#allocation9 + $0x28] sm:$0xf]
    %v348 = vld [vmem:[#allocation9 + $0x2c] sm:$0xf]
    %v349 = vld [vmem:[#allocation9 + $0x30] sm:$0xf]
    %v350 = vld [vmem:[#allocation9 + $0x34] sm:$0xf]
    %v351 = vld [vmem:[#allocation9 + $0x38] sm:$0xf]
    %v352 = vld [vmem:[#allocation9 + $0x3c] sm:$0xf]
    %v353 = vld [vmem:[%s6] sm:$0x1]
    %v355 = vperm.slane %v353, 0
    %v373 = vunpack.c.l.b16 %v337
    %v374 = vunpack.c.l.b16 %v338
    %v375 = vunpack.c.l.b16 %v339
    %v376 = vunpack.c.l.b16 %v340
    %v377 = vunpack.c.l.b16 %v341
    %v378 = vunpack.c.l.b16 %v342
    %v379 = vunpack.c.l.b16 %v343
    %v380 = vunpack.c.l.b16 %v344
    %v381 = vunpack.c.l.b16 %v345
    %v382 = vunpack.c.l.b16 %v346
    %v383 = vunpack.c.l.b16 %v347
    %v384 = vunpack.c.l.b16 %v348
    %v385 = vunpack.c.l.b16 %v349
    %v386 = vunpack.c.l.b16 %v350
    %v387 = vunpack.c.l.b16 %v351
    %v388 = vunpack.c.l.b16 %v352
    %v389 = vpack.c.b16 %v374, %v373
    %v390 = vpack.c.b16 %v376, %v375
    %v391 = vpack.c.b16 %v378, %v377
    %v392 = vpack.c.b16 %v380, %v379
    %v393 = vpack.c.b16 %v382, %v381
    %v394 = vpack.c.b16 %v384, %v383
    %v395 = vpack.c.b16 %v386, %v385
    %v396 = vpack.c.b16 %v388, %v387
    %405 = vmatpush.bf16.msra.mxu0 %v396
    %406 = vmatpush.bf16.msra.mxu0 %v395
    %407 = vmatpush.bf16.msra.mxu0 %v394
    %408 = vmatpush.bf16.msra.mxu0 %v393
    %409 = vmatpush.bf16.msra.mxu0 %v392
    %410 = vmatpush.bf16.msra.mxu0 %v391
    %411 = vmatpush.bf16.msra.mxu0 %v390
    %412 = vmatpush.bf16.msra.mxu0 %v389
    %413 = vmatmul.bf16.gmra.mxu0 %v336
    %v414 = vpop.f32.mrf.mxu0
    %v415 = vadd.f32 %v355, %v414
    %v416 = vpop.f32.mrf.mxu0
    %417 = vdwg.mxu0
    %v418 = vmax.f32 %v415, 0.0
    %v419 = vpack.c.bf16 %v418, %v418
    %v420 = vld [vmem:[#allocation11] sm:$0xf]
    %v421 = vld [vmem:[#allocation11 + $0x4] sm:$0xf]
    %v422 = vld [vmem:[#allocation11 + $0x8] sm:$0xf]
    %v423 = vld [vmem:[#allocation11 + $0xc] sm:$0xf]
    %v424 = vld [vmem:[#allocation11 + $0x10] sm:$0xf]
    %v425 = vld [vmem:[#allocation11 + $0x14] sm:$0xf]
    %v426 = vld [vmem:[#allocation11 + $0x18] sm:$0xf]
    %v427 = vld [vmem:[#allocation11 + $0x1c] sm:$0xf]
    %v428 = vld [vmem:[#allocation11 + $0x20] sm:$0xf]
    %v429 = vld [vmem:[#allocation11 + $0x24] sm:$0xf]
    %v430 = vld [vmem:[#allocation11 + $0x28] sm:$0xf]
    %v431 = vld [vmem:[#allocation11 + $0x2c] sm:$0xf]
    %v432 = vld [vmem:[#allocation11 + $0x30] sm:$0xf]
    %v433 = vld [vmem:[#allocation11 + $0x34] sm:$0xf]
    %v434 = vld [vmem:[#allocation11 + $0x38] sm:$0xf]
    %v435 = vld [vmem:[#allocation11 + $0x3c] sm:$0xf]
    %v436 = vld [vmem:[%s8] sm:$0x1]
    %v438 = vperm.slane %v436, 0
    %v456 = vunpack.c.l.b16 %v420
    %v457 = vunpack.c.l.b16 %v421
    %v458 = vunpack.c.l.b16 %v422
    %v459 = vunpack.c.l.b16 %v423
    %v460 = vunpack.c.l.b16 %v424
    %v461 = vunpack.c.l.b16 %v425
    %v462 = vunpack.c.l.b16 %v426
    %v463 = vunpack.c.l.b16 %v427
    %v464 = vunpack.c.l.b16 %v428
    %v465 = vunpack.c.l.b16 %v429
    %v466 = vunpack.c.l.b16 %v430
    %v467 = vunpack.c.l.b16 %v431
    %v468 = vunpack.c.l.b16 %v432
    %v469 = vunpack.c.l.b16 %v433
    %v470 = vunpack.c.l.b16 %v434
    %v471 = vunpack.c.l.b16 %v435
    %v472 = vpack.c.b16 %v457, %v456
    %v473 = vpack.c.b16 %v459, %v458
    %v474 = vpack.c.b16 %v461, %v460
    %v475 = vpack.c.b16 %v463, %v462
    %v476 = vpack.c.b16 %v465, %v464
    %v477 = vpack.c.b16 %v467, %v466
    %v478 = vpack.c.b16 %v469, %v468
    %v479 = vpack.c.b16 %v471, %v470
    %488 = vmatpush.bf16.msra.mxu0 %v479
    %489 = vmatpush.bf16.msra.mxu0 %v478
    %490 = vmatpush.bf16.msra.mxu0 %v477
    %491 = vmatpush.bf16.msra.mxu0 %v476
    %492 = vmatpush.bf16.msra.mxu0 %v475
    %493 = vmatpush.bf16.msra.mxu0 %v474
    %494 = vmatpush.bf16.msra.mxu0 %v473
    %495 = vmatpush.bf16.msra.mxu0 %v472
    %496 = vmatmul.bf16.gmra.mxu0 %v419
    %v497 = vpop.f32.mrf.mxu0
    %v498 = vadd.f32 %v438, %v497
    %v499 = vpop.f32.mrf.mxu0
    %500 = vdwg.mxu0
    %v501 = vmax.f32 %v498, 0.0
    %v502 = vpack.c.bf16 %v501, %v501
    %v503 = vld [vmem:[#allocation12] sm:$0xf]
    %v504 = vld [vmem:[#allocation12 + $0x4] sm:$0xf]
    %v505 = vld [vmem:[#allocation12 + $0x8] sm:$0xf]
    %v506 = vld [vmem:[#allocation12 + $0xc] sm:$0xf]
    %v507 = vld [vmem:[#allocation12 + $0x10] sm:$0xf]
    %v508 = vld [vmem:[#allocation12 + $0x14] sm:$0xf]
    %v509 = vld [vmem:[#allocation12 + $0x18] sm:$0xf]
    %v510 = vld [vmem:[#allocation12 + $0x1c] sm:$0xf]
    %v511 = vld [vmem:[#allocation12 + $0x20] sm:$0xf]
    %v512 = vld [vmem:[#allocation12 + $0x24] sm:$0xf]
    %v513 = vld [vmem:[#allocation12 + $0x28] sm:$0xf]
    %v514 = vld [vmem:[#allocation12 + $0x2c] sm:$0xf]
    %v515 = vld [vmem:[#allocation12 + $0x30] sm:$0xf]
    %v516 = vld [vmem:[#allocation12 + $0x34] sm:$0xf]
    %v517 = vld [vmem:[#allocation12 + $0x38] sm:$0xf]
    %v518 = vld [vmem:[#allocation12 + $0x3c] sm:$0xf]
    %v519 = vld [vmem:[%s10] sm:$0x1]
    %v521 = vperm.slane %v519, 0
    %v539 = vunpack.c.l.b16 %v503
    %v540 = vunpack.c.l.b16 %v504
    %v541 = vunpack.c.l.b16 %v505
    %v542 = vunpack.c.l.b16 %v506
    %v543 = vunpack.c.l.b16 %v507
    %v544 = vunpack.c.l.b16 %v508
    %v545 = vunpack.c.l.b16 %v509
    %v546 = vunpack.c.l.b16 %v510
    %v547 = vunpack.c.l.b16 %v511
    %v548 = vunpack.c.l.b16 %v512
    %v549 = vunpack.c.l.b16 %v513
    %v550 = vunpack.c.l.b16 %v514
    %v551 = vunpack.c.l.b16 %v515
    %v552 = vunpack.c.l.b16 %v516
    %v553 = vunpack.c.l.b16 %v517
    %v554 = vunpack.c.l.b16 %v518
    %v555 = vpack.c.b16 %v540, %v539
    %v556 = vpack.c.b16 %v542, %v541
    %v557 = vpack.c.b16 %v544, %v543
    %v558 = vpack.c.b16 %v546, %v545
    %v559 = vpack.c.b16 %v548, %v547
    %v560 = vpack.c.b16 %v550, %v549
    %v561 = vpack.c.b16 %v552, %v551
    %v562 = vpack.c.b16 %v554, %v553
    %571 = vmatpush.bf16.msra.mxu0 %v562
    %572 = vmatpush.bf16.msra.mxu0 %v561
    %573 = vmatpush.bf16.msra.mxu0 %v560
    %574 = vmatpush.bf16.msra.mxu0 %v559
    %575 = vmatpush.bf16.msra.mxu0 %v558
    %576 = vmatpush.bf16.msra.mxu0 %v557
    %577 = vmatpush.bf16.msra.mxu0 %v556
    %578 = vmatpush.bf16.msra.mxu0 %v555
    %579 = vmatmul.bf16.gmra.mxu0 %v502
    %v580 = vpop.f32.mrf.mxu0
    %v581 = vadd.f32 %v521, %v580
    %v582 = vpop.f32.mrf.mxu0
    %583 = vdwg.mxu0
    %v584 = vmax.f32 %v581, 0.0
    %585 = vxpose.xlu0.b32.start [1/16] %v584, 128
    %586 = vxpose.xlu0.b32.cont [2/16] 0.0, 128
    %587 = vxpose.xlu0.b32.cont [3/16] 0.0, 128
    %588 = vxpose.xlu0.b32.cont [4/16] 0.0, 128
    %589 = vxpose.xlu0.b32.cont [5/16] 0.0, 128
    %590 = vxpose.xlu0.b32.cont [6/16] 0.0, 128
    %591 = vxpose.xlu0.b32.cont [7/16] 0.0, 128
    %592 = vxpose.xlu0.b32.cont [8/16] 0.0, 128
    %593 = vxpose.xlu0.b32.cont [9/16] 0.0, 128
    %594 = vxpose.xlu0.b32.cont [10/16] 0.0, 128
    %595 = vxpose.xlu0.b32.cont [11/16] 0.0, 128
    %596 = vxpose.xlu0.b32.cont [12/16] 0.0, 128
    %597 = vxpose.xlu0.b32.cont [13/16] 0.0, 128
    %598 = vxpose.xlu0.b32.cont [14/16] 0.0, 128
    %599 = vxpose.xlu0.b32.cont [15/16] 0.0, 128
    %600 = vxpose.xlu0.b32.end [16/16] 0.0, 128
    %v601 = vpop.trf.xlu0
    %v602 = vpop.trf.xlu0
    %v603 = vpop.trf.xlu0
    %v604 = vpop.trf.xlu0
    %v605 = vpop.trf.xlu0
    %v606 = vpop.trf.xlu0
    %v607 = vpop.trf.xlu0
    %v608 = vpop.trf.xlu0
    %v609 = vpop.trf.xlu0
    %v610 = vpop.trf.xlu0
    %v611 = vpop.trf.xlu0
    %v612 = vpop.trf.xlu0
    %v613 = vpop.trf.xlu0
    %v614 = vpop.trf.xlu0
    %v615 = vpop.trf.xlu0
    %v616 = vpop.trf.xlu0
    %v617 = vld [vmem:[%s11] sm:$0x1]
    %v618 = vpack.c.bf16 %v602, %v601
    %v619 = vpack.c.bf16 %v604, %v603
    %v620 = vpack.c.bf16 %v606, %v605
    %v621 = vpack.c.bf16 %v608, %v607
    %v622 = vpack.c.bf16 %v610, %v609
    %v623 = vpack.c.bf16 %v612, %v611
    %v624 = vpack.c.bf16 %v614, %v613
    %v625 = vpack.c.bf16 %v616, %v615
    %v626 = vld [vmem:[#allocation2] sm:$0x1]
    %628 = vset.pattern.permute.xlu0 0
    %629 = vperm.xlu0 %628, %v626
    %v630 = vpop.permute.xlu0 %629
    %v632 = vperm.slane %v630, 0
    %633 = vmatpush.bf16.msra.mxu0 %v625
    %634 = vmatpush.bf16.msra.mxu0 %v624
    %635 = vmatpush.bf16.msra.mxu0 %v623
    %636 = vmatpush.bf16.msra.mxu0 %v622
    %637 = vmatpush.bf16.msra.mxu0 %v621
    %638 = vmatpush.bf16.msra.mxu0 %v620
    %639 = vmatpush.bf16.msra.mxu0 %v619
    %640 = vmatpush.bf16.msra.mxu0 %v618
    %641 = vmatmul.bf16.gmra.mxu0 %v617
    %v642 = vpop.f32.mrf.mxu0
    %v643 = vadd.f32 %v632, %v642
    %v644 = vpop.f32.mrf.mxu0
    %645 = vdwg.mxu0
    %vm646 = vcmask 8192
    %647 = vst.msk [vmem:[#allocation14] sm:$0x1] %vm646, %v643
    // Predicated region
    $region78: #{tpu_custom_call.1} parent=1 // pred_check
      _
    $region79: #{tpu_custom_call.1} parent=1 // pred_check_branch
      %649 = sbr.rel (0) target = $region81
    $region80: #{tpu_custom_call.1} parent=1 // pred_region
      %651 = vsyncadd [#allocation5], 0
      %s653 = sshll.u32 [#allocation14], 4
      %s654 = int_to_ptr.vmem [resolvable:$true] %s653
      %s655 = sshll.u32 %s13, 4
      %s656 = int_to_ptr.hbm [resolvable:$true] %s655
      %658 = dma.vmem_to_hbm [thread:$0]  %s654, 16, %s656, [#allocation5]
    $region81: #{tpu_custom_call.1} parent=1 // pred_fallthru
      _
    // Predicated region
    $region82: #{tpu_custom_call.1} parent=1 // pred_check
      _
    $region83: #{tpu_custom_call.1} parent=1 // pred_check_branch
      %660 = sbr.rel (0) target = $region85
    $region84: #{tpu_custom_call.1} parent=1 // pred_region
      %662 = dma.done [#allocation5], 16
    $region85: #{tpu_custom_call.1} parent=1 // pred_fallthru
      _
    %663 = vsyncpa [#allocation4], 1
    %664 = vsyncpa [#allocation7], 1
    %665 = vsyncpa [#allocation10], 1
    %666 = vsyncpa [#allocation13], 1
    %667 = vsyncpa [#allocation5], 1

</llo_original>
